<compile_context>
chip_gen: v6e
topology: v6e:2x2x1
jax: 0.10.0
libtpu: 0.0.40
codegen_flags: <defaults>
</compile_context>

<pallas_src>
import jax
import jax.numpy as jnp
from jax.experimental import pallas as pl
from jax.experimental.pallas import tpu as pltpu

_LANE = 128
_SUBLANE = 8


def _round_up(x, m):
    return ((x + m - 1) // m) * m


def _pick_row_tile(rows_padded, rows_cap):
    """Largest multiple-of-8 divisor of rows_padded that fits rows_cap.

    When rows_padded >= 16 the tile is additionally capped at rows_padded // 2 so
    the row grid has at least two steps (lets the "parallel" axis shard across
    both v7x TensorCores; harmless on single-core v5e/v6e).
    """
    cap = rows_cap
    if rows_padded >= 2 * _SUBLANE:
        cap = min(cap, rows_padded // 2)
    cap = max(cap, _SUBLANE)
    best = _SUBLANE
    tb = _SUBLANE
    limit = min(cap, rows_padded)
    while tb <= limit:
        if rows_padded % tb == 0:
            best = tb
        tb += _SUBLANE
    return best


def normalize_pallas(x, mean, std, *, target_block_bytes=6 * 1024 * 1024):
    """Per-channel normalize of an NCHW (or CHW) tensor: (x - mean) / std."""
    orig_shape = x.shape
    x4 = x[None] if x.ndim == 3 else x.reshape((-1,) + x.shape[-3:])
    N, C, H, W = x4.shape
    itemsize = jnp.dtype(x.dtype).itemsize

    # Per-channel constants stay in float32; only the result is cast to x.dtype.
    mean_c = jnp.asarray(mean, dtype=jnp.float32).reshape(C)
    inv_std_c = 1.0 / jnp.asarray(std, dtype=jnp.float32).reshape(C)

    # ---- layout: pick the 2-D flattening with the least (8, 128) padding ----
    #   A: rows = N*C   (one row per plane),      lanes = H*W
    #   B: rows = N*C*H (one row per image line), lanes = W
    cost_a = _round_up(N * C, _SUBLANE) * _round_up(H * W, _LANE)
    cost_b = _round_up(N * C * H, _SUBLANE) * _round_up(W, _LANE)
    if cost_a <= cost_b:
        R, L, reps = N * C, H * W, 1
    else:
        R, L, reps = N * C * H, W, H
    mean_rows = jnp.tile(jnp.repeat(mean_c, reps), N).reshape(R, 1)
    inv_rows = jnp.tile(jnp.repeat(inv_std_c, reps), N).reshape(R, 1)

    # ---- tiling: big lane-dense blocks (~target_block_bytes per buffer) ----
    L128 = _round_up(L, _LANE)
    if _SUBLANE * L128 * itemsize <= target_block_bytes:
        TW = L128                                    # whole row fits: 1 lane step
    else:
        TW = max(_LANE,
                 (target_block_bytes // (_SUBLANE * itemsize)) // _LANE * _LANE)
    Lp = _round_up(L, TW)
    Rp = _round_up(R, _SUBLANE)
    rows_cap = max(_SUBLANE, target_block_bytes // (TW * itemsize))
    TB = _pick_row_tile(Rp, rows_cap)
    grid = (Rp // TB, Lp // TW)

    # ---- pad to sublane/lane-legal shapes (demo shapes need no padding) ----
    xf = x4.reshape(R, L)
    if (Rp, Lp) != (R, L):
        xf = jnp.pad(xf, ((0, Rp - R), (0, Lp - L)))
    if Rp != R:
        mean_rows = jnp.pad(mean_rows, ((0, Rp - R), (0, 0)))
        inv_rows = jnp.pad(inv_rows, ((0, Rp - R), (0, 0)), constant_values=1.0)

    # Keep the (Rp, 1) constants resident in VMEM (fetched once) when small;
    # a lane-padded (Rp, 1) f32 column occupies Rp/8 * 4 KiB of VMEM.
    resident = Rp <= 2048

    def kernel(x_ref, mean_ref, inv_std_ref, o_ref):
        if resident:
            r0 = pl.multiple_of(pl.program_id(0) * TB, _SUBLANE)
            m = mean_ref[pl.ds(r0, TB), :]
            s = inv_std_ref[pl.ds(r0, TB), :]
        else:
            m = mean_ref[...]
            s = inv_std_ref[...]
        xv = x_ref[...].astype(jnp.float32)
        o_ref[...] = ((xv - m) * s).astype(o_ref.dtype)

    if resident:
        const_spec = pl.BlockSpec((Rp, 1), lambda i, j: (0, 0))   # fetched once
    else:
        const_spec = pl.BlockSpec((TB, 1), lambda i, j: (i, 0))

    block_bytes = TB * TW * itemsize
    vmem_limit_bytes = int(min(56 * 1024 * 1024,
                               max(32 * 1024 * 1024,
                                   4 * block_bytes + 8 * 1024 * 1024)))

    out = pl.pallas_call(
        kernel,
        out_shape=jax.ShapeDtypeStruct((Rp, Lp), x.dtype),
        grid_spec=pl.GridSpec(
            grid=grid,
            in_specs=[
                pl.BlockSpec((TB, TW), lambda i, j: (i, j)),
                const_spec,
                const_spec,
            ],
            out_specs=pl.BlockSpec((TB, TW), lambda i, j: (i, j)),
        ),
        compiler_params=pltpu.CompilerParams(
            dimension_semantics=("parallel", "parallel"),
            vmem_limit_bytes=vmem_limit_bytes,
        ),
    )(xf, mean_rows, inv_rows)

    if (Rp, Lp) != (R, L):
        out = out[:R, :L]
    return out.reshape(orig_shape)


def normalize_forward(in_tensor, target, mean, std):
    """Forward pass of the Normalize module: normalize image, pass target through."""
    return normalize_pallas(in_tensor, mean, std), target


if __name__ == "__main__":
    key = jax.random.PRNGKey(0)
    k_img, k_tgt = jax.random.split(key, 2)

    # Small NCHW image and (N, H, W) integer segmentation target.
    image = jax.random.normal(k_img, (2, 4, 16, 16), dtype=jnp.float32)
    target = jax.random.randint(k_tgt, (2, 16, 16), 0, 5, dtype=jnp.int32)

    mean = [0.485, 0.456, 0.406, 0.5]
    std = [0.229, 0.224, 0.225, 0.25]

    out_img, out_tgt = normalize_forward(image, target, mean, std)
    out_img = jax.block_until_ready(out_img)

    # Reference: per-channel (x - mean) / std.
    mean_a = jnp.asarray(mean, dtype=jnp.float32)[None, :, None, None]
    std_a = jnp.asarray(std, dtype=jnp.float32)[None, :, None, None]
    ref = (image - mean_a) / std_a

    assert out_img.shape == image.shape and out_img.dtype == image.dtype
    assert out_tgt is target  # target passes through untouched
    assert jnp.allclose(out_img, ref, rtol=1e-5, atol=1e-5)

    print("KERNEL_OK")
</pallas_src>

<mosaic_0001>
module attributes {stable_mosaic.version = 11 : i64} {
  func.func @kernel(%arg0: i32, %arg1: i32, %arg2: memref<8x256xf32, #tpu.memory_space<vmem>>, %arg3: memref<8x1xf32, #tpu.memory_space<vmem>>, %arg4: memref<8x1xf32, #tpu.memory_space<vmem>>, %arg5: memref<8x256xf32, #tpu.memory_space<vmem>>) attributes {dimension_semantics = [#tpu.dimension_semantics<parallel>, #tpu.dimension_semantics<parallel>], iteration_bounds = array<i64: 1, 1>, scalar_prefetch = 0 : i64, scratch_operands = 0 : i64, tpu.core_type = #tpu.core_type<tc>, window_params = [{transform_indices = @transform_0, window_bounds = array<i64: 8, 256>}, {pipeline_mode = #tpu.pipeline_mode<synchronous>, transform_indices = @transform_1, window_bounds = array<i64: 8, 1>}, {pipeline_mode = #tpu.pipeline_mode<synchronous>, transform_indices = @transform_2, window_bounds = array<i64: 8, 1>}, {transform_indices = @transform_3, window_bounds = array<i64: 8, 256>}]} {
    %c8_i32 = arith.constant 8 : i32
    %0 = arith.muli %arg0, %c8_i32 : i32
    %1 = tpu.assume_multiple %0, 8 : i32
    %2 = arith.index_cast %1 : i32 to index
    %c0 = arith.constant 0 : index
    %3 = vector.load %arg3[%2, %c0] : memref<8x1xf32, #tpu.memory_space<vmem>>, vector<8x1xf32>
    %4 = arith.index_cast %1 : i32 to index
    %c0_0 = arith.constant 0 : index
    %5 = vector.load %arg4[%4, %c0_0] : memref<8x1xf32, #tpu.memory_space<vmem>>, vector<8x1xf32>
    %c0_1 = arith.constant 0 : index
    %c0_2 = arith.constant 0 : index
    %6 = vector.load %arg2[%c0_1, %c0_2] : memref<8x256xf32, #tpu.memory_space<vmem>>, vector<8x256xf32>
    %7 = vector.broadcast %3 : vector<8x1xf32> to vector<8x256xf32>
    %8 = arith.subf %6, %7 : vector<8x256xf32>
    %9 = vector.broadcast %5 : vector<8x1xf32> to vector<8x256xf32>
    %10 = arith.mulf %8, %9 : vector<8x256xf32>
    %c0_3 = arith.constant 0 : index
    %c0_4 = arith.constant 0 : index
    %11 = vector.load %arg5[%c0_3, %c0_4] : memref<8x256xf32, #tpu.memory_space<vmem>>, vector<8x256xf32>
    tpu.vector_store %arg5[%c0_3, %c0_4], %10 {strides = array<i32>} : memref<8x256xf32, #tpu.memory_space<vmem>>, vector<8x256xf32>,
    return
  }
  func.func @transform_0(%arg0: i32, %arg1: i32) -> (i32, i32) {
    %c0_i32 = arith.constant 0 : i32
    return %arg0, %arg1 : i32, i32
  }
  func.func @transform_1(%arg0: i32, %arg1: i32) -> (i32, i32) {
    %c0_i32 = arith.constant 0 : i32
    %c0_i32_0 = arith.constant 0 : i32
    %c0_i32_1 = arith.constant 0 : i32
    return %c0_i32, %c0_i32_0 : i32, i32
  }
  func.func @transform_2(%arg0: i32, %arg1: i32) -> (i32, i32) {
    %c0_i32 = arith.constant 0 : i32
    %c0_i32_0 = arith.constant 0 : i32
    %c0_i32_1 = arith.constant 0 : i32
    return %c0_i32, %c0_i32_0 : i32, i32
  }
  func.func @transform_3(%arg0: i32, %arg1: i32) -> (i32, i32) {
    %c0_i32 = arith.constant 0 : i32
    return %arg0, %arg1 : i32, i32
  }
}

</mosaic_0001>

<llo_original>
// kernel: tpu_custom_call.1
$region0: #{tpu_custom_call.1}
  #allocation0 [shape = 'u32[]', space=smem, size = 0x4, offset = 0x4, fixed_abs, tag = 'smem constant byte address 0x4 - core index']
  #allocation1 [shape = 'u32[144,128]{1,0:T(1,128)}', space=vmem, size = 0x12000, scoped, tag = 'internal scratch']
  %s0 = inlined_call_operand.vmem [shape: f32[8,256], index: 0, kind: input, shape index: {}]
  %s1 = inlined_call_operand.vmem [shape: f32[8,1], index: 1, kind: input, shape index: {}]
  %s2 = inlined_call_operand.vmem [shape: f32[8,1], index: 2, kind: input, shape index: {}]
  %s3 = inlined_call_operand.hbm [shape: f32[8,256], index: 3, kind: output, shape index: {}]
  %s4 = sld [smem:[#allocation0]]
  $region22: #{tpu_custom_call.1} parent=0
    _
  %s6 = ssub.s32 1, %s4
  %s7 = scalar_select 0, %s6, %s4
  $region1: #{tpu_custom_call.1} parent=0
    #allocation2 [shape = 'u8[8192]{0}', space=vmem, size = 0x2000, scoped, tag = 'output window, operand 0, single buffered']
    #allocation3 [shape = 's32[1]{0}', space=sflag, size = 0x4, scoped, tag = 'scoped memory for tpu_custom_call.1']
    %8 = vsyncpa [#allocation3], 0
    // Predicated region
    $region2: #{tpu_custom_call.1} parent=1 // pred_check
      _
    $region3: #{tpu_custom_call.1} parent=1 // pred_check_branch
      %10 = sbr.rel (0) target = $region5
    $region4: #{tpu_custom_call.1} parent=1 // pred_region
      _
    $region5: #{tpu_custom_call.1} parent=1 // pred_fallthru
      _
    // Predicated region
    $region6: #{tpu_custom_call.1} parent=1 // pred_check
      _
    $region7: #{tpu_custom_call.1} parent=1 // pred_check_branch
      %12 = sbr.rel (0) target = $region9
    $region8: #{tpu_custom_call.1} parent=1 // pred_region
      _
    $region9: #{tpu_custom_call.1} parent=1 // pred_fallthru
      _
    // Predicated region
    $region10: #{tpu_custom_call.1} parent=1 // pred_check
      _
    $region11: #{tpu_custom_call.1} parent=1 // pred_check_branch
      %14 = sbr.rel (0) target = $region13
    $region12: #{tpu_custom_call.1} parent=1 // pred_region
      _
    $region13: #{tpu_custom_call.1} parent=1 // pred_fallthru
      _
    %s15 = smul.u32 0, 8
    %s16 = scalar_lea.vmem %s1, %s15
    %v17 = vld [vmem:[%s16] sm:$0xff]
    %s18 = scalar_lea.vmem %s2, %s15
    %v19 = vld [vmem:[%s18] sm:$0xff]
    %v20 = vld [vmem:[%s0] sm:$0xff]
    %v21 = vld [vmem:[%s0 + $0x8] sm:$0xff]
    %23 = vset.pattern.permute.xlu0 0
    %24 = vperm.xlu0 %23, %v17
    %v25 = vpop.permute.xlu0 %24
    %v27 = vsub.f32 %v20, %v25
    %v28 = vsub.f32 %v21, %v25
    %30 = vset.pattern.permute.xlu0 0
    %31 = vperm.xlu0 %30, %v19
    %v32 = vpop.permute.xlu0 %31
    %v34 = vmul.f32 %v27, %v32
    %v35 = vmul.f32 %v28, %v32
    %36 = vst [vmem:[#allocation2] sm:$0xff] %v34
    %37 = vst [vmem:[#allocation2 + $0x8] sm:$0xff] %v35
    // Predicated region
    $region14: #{tpu_custom_call.1} parent=1 // pred_check
      _
    $region15: #{tpu_custom_call.1} parent=1 // pred_check_branch
      %39 = sbr.rel (0) target = $region17
    $region16: #{tpu_custom_call.1} parent=1 // pred_region
      %s41 = ssub.s32 256, 256
      %42 = vsyncadd [#allocation3], %s41
      %s44 = sshll.u32 [#allocation2], 4
      %s45 = int_to_ptr.vmem [resolvable:$true] %s44
      %47 = dma.vmem_to_hbm [thread:$0]  %s45, 256, %s3, [#allocation3]
    $region17: #{tpu_custom_call.1} parent=1 // pred_fallthru
      _
    // Predicated region
    $region18: #{tpu_custom_call.1} parent=1 // pred_check
      _
    $region19: #{tpu_custom_call.1} parent=1 // pred_check_branch
      %49 = sbr.rel (0) target = $region21
    $region20: #{tpu_custom_call.1} parent=1 // pred_region
      %50 = dma.done [#allocation3], 256
    $region21: #{tpu_custom_call.1} parent=1 // pred_fallthru
      _
    %51 = vsyncpa [#allocation3], 1

</llo_original>
